<compile_context>
chip_gen: v7x
topology: tpu7x:2x2x1
jax: 0.10.0
libtpu: 0.0.40
codegen_flags: <defaults>
</compile_context>

<pallas_src>
import time

import jax
import jax.numpy as jnp
import numpy as np
from jax.experimental import pallas as pl
from jax.experimental.pallas import tpu as pltpu  # noqa: F401  (TPU backend assumed)

SCALE = 0.0472
ZERO_POINT = 64
LANES = 128

# TODO(synk): torch.quint8 tensors carry scale/zero_point metadata; there is no JAX quantized
# dtype, so they are modeled as uint8 storage + the module-level SCALE / ZERO_POINT constants.


# ----------------------------- Pallas kernels ---------------------------------------
# All kernels see their operands as one whole-tensor VMEM block (tensors are tiny).
# Arithmetic is f32 / int32 in-vreg; uint8 only at the HBM load/store boundary.


def _quantize_kernel(x_ref, q_ref):
    # quint8 affine quantization: q = clamp(round(x / scale) + zp, 0, 255)
    q = jnp.round(x_ref[...] / SCALE).astype(jnp.int32) + ZERO_POINT
    q_ref[...] = jnp.clip(q, 0, 255).astype(jnp.uint8)


def _qrelu_kernel(q_ref, o_ref):
    # quantized ReLU == clamp at the zero point (same scale/zp in and out)
    o_ref[...] = jnp.maximum(q_ref[...].astype(jnp.int32), ZERO_POINT).astype(jnp.uint8)


def _qmaxpool_kernel(w_ref, o_ref):
    # w_ref: (4, rows, 128) uint8 — the four taps of each 2x2 window; pool == elementwise max.
    w = w_ref[...].astype(jnp.int32)
    m = jnp.maximum(jnp.maximum(w[0], w[1]), jnp.maximum(w[2], w[3]))
    o_ref[...] = m.astype(jnp.uint8)


def _quant_relu_kernel(x_ref, o_ref):
    # fused quantize -> quantized ReLU == clamp(round(x/scale) + zp, zp, 255)
    q = jnp.round(x_ref[...] / SCALE).astype(jnp.int32) + ZERO_POINT
    o_ref[...] = jnp.clip(q, ZERO_POINT, 255).astype(jnp.uint8)


def _quant_maxpool_kernel(w_ref, o_ref):
    # fused quantize -> 2x2 maxpool.  w_ref: (4, rows, 128) float32 window taps.
    # quantization is monotone non-decreasing, so max-then-quantize == quantize-then-max.
    w = w_ref[...]
    m = jnp.maximum(jnp.maximum(w[0], w[1]), jnp.maximum(w[2], w[3]))
    q = jnp.round(m / SCALE).astype(jnp.int32) + ZERO_POINT
    o_ref[...] = jnp.clip(q, 0, 255).astype(jnp.uint8)


# ----------------------------- wrappers ----------------------------------------------


def _as_lanes(x):
    total = x.size
    assert total % LANES == 0, "module shapes chosen so total elements % 128 == 0"
    return x.reshape(total // LANES, LANES)  # contiguous -> free reshape


def _pool_taps(x):
    # NCHW -> (4, rows, 128): leading axis = the four 2x2 window taps.  Pure layout plumbing,
    # fused by XLA into the pallas_call operand under jit.
    # TODO(synk): tap extraction stays host-side; lane-interleaved 2x2 compaction has no
    # robust in-kernel Mosaic lowering at these tiny shapes (the reduction is in-kernel).
    n, c, h, w = x.shape
    ho, wo = h // 2, w // 2
    t = x.reshape(n * c, ho, 2, wo, 2)
    taps = t.transpose(2, 4, 0, 1, 3).reshape(4, -1)
    total = taps.shape[1]
    assert total % LANES == 0
    return taps.reshape(4, total // LANES, LANES), (n, c, ho, wo)


def _whole_block_call(kernel, x):
    # single whole-tensor block: no grid, no BlockSpec tiling, operands live fully in VMEM.
    return pl.pallas_call(
        kernel, out_shape=jax.ShapeDtypeStruct(x.shape[-2:], jnp.uint8)
    )(x)


@jax.jit
def quantize_per_tensor(x):
    """float32 tensor -> quint8 (uint8 storage), scale=0.0472, zero_point=64."""
    x2 = _as_lanes(x.astype(jnp.float32))
    return _whole_block_call(_quantize_kernel, x2).reshape(x.shape)


@jax.jit
def quantized_relu(q):
    """nn.ReLU() on a quint8 tensor."""
    x2 = _as_lanes(q)
    return _whole_block_call(_qrelu_kernel, x2).reshape(q.shape)


@jax.jit
def quantized_maxpool2x2(q):
    """nn.MaxPool2d(kernel_size=2, stride=2) on a quint8 NCHW tensor."""
    taps, (n, c, ho, wo) = _pool_taps(q)
    return _whole_block_call(_qmaxpool_kernel, taps).reshape(n, c, ho, wo)


@jax.jit
def quantize_then_relu(x):
    """Fused benchmark stage: quantize_per_tensor + nn.ReLU() in one Pallas kernel."""
    x2 = _as_lanes(x.astype(jnp.float32))
    return _whole_block_call(_quant_relu_kernel, x2).reshape(x.shape)


@jax.jit
def quantize_then_maxpool2x2(x):
    """Fused benchmark stage: quantize_per_tensor + nn.MaxPool2d(2, 2) in one Pallas kernel."""
    taps, (n, c, ho, wo) = _pool_taps(x.astype(jnp.float32))
    return _whole_block_call(_quant_maxpool_kernel, taps).reshape(n, c, ho, wo)


# ----------------------------- VGG19 client module -----------------------------------


class VGG19:
    """Mirrors the PyTorch benchmarking module at small synthetic shapes (batch=2)."""

    def __init__(self, batch_size=2):
        b = batch_size
        # stage index -> activation shape (scaled down from the 224x224 VGG19 sizes)
        self.shapes = {
            1: (b, 8, 32, 32), 3: (b, 8, 32, 32), 4: (b, 8, 32, 32),
            6: (b, 16, 16, 16), 8: (b, 16, 16, 16), 9: (b, 16, 16, 16),
            11: (b, 32, 8, 8), 13: (b, 32, 8, 8), 15: (b, 32, 8, 8),
            17: (b, 32, 8, 8), 18: (b, 32, 8, 8),
            20: (b, 64, 4, 4), 22: (b, 64, 4, 4), 24: (b, 64, 4, 4),
            26: (b, 64, 4, 4), 27: (b, 64, 4, 4),
            29: (b, 64, 2, 2), 31: (b, 64, 2, 2), 33: (b, 64, 2, 2),
            35: (b, 64, 2, 2), 36: (b, 64, 2, 2),
            39: (b, 128), 41: (b, 128),
        }
        pool_stages = (4, 9, 18, 27, 36)
        self.ops = {i: ("maxpool" if i in pool_stages else "relu") for i in self.shapes}
        self.time = {}
        self._key = jax.random.PRNGKey(0)

    def _rand(self, shape):
        self._key, sub = jax.random.split(self._key)
        return jax.random.uniform(sub, shape, dtype=jnp.float32)

    def _stage_fn(self, i):
        return quantize_then_maxpool2x2 if self.ops[i] == "maxpool" else quantize_then_relu

    def forward(self, i):
        while True:
            if i in self.ops:
                fused = self._stage_fn(i)
                # warm-up (compile + 5 runs, mirrors the PyTorch warm loop)
                xw = jax.block_until_ready(self._rand(self.shapes[i]))
                for _ in range(5):
                    jax.block_until_ready(fused(xw))
                # timed: pre-generated, already-materialized input; min of repeated runs
                x = jax.block_until_ready(self._rand(self.shapes[i]))
                best = float("inf")
                for _ in range(10):
                    start = time.time()
                    jax.block_until_ready(fused(x))
                    best = min(best, time.time() - start)
                self.time["OP{}".format(i)] = best
                i = i + 1
            else:
                return i


# ----------------------------- main ---------------------------------------------------


if __name__ == "__main__":
    # ---- correctness checks against plain-JAX references ----
    key = jax.random.PRNGKey(0)
    x = jax.random.uniform(key, (2, 8, 32, 32), dtype=jnp.float32)

    q = jax.block_until_ready(quantize_per_tensor(x))
    q_ref = jnp.clip(
        jnp.round(x / SCALE).astype(jnp.int32) + ZERO_POINT, 0, 255
    ).astype(jnp.uint8)
    np.testing.assert_array_equal(np.asarray(q), np.asarray(q_ref))

    r = jax.block_until_ready(quantized_relu(q))
    r_ref = jnp.maximum(q_ref.astype(jnp.int32), ZERO_POINT).astype(jnp.uint8)
    np.testing.assert_array_equal(np.asarray(r), np.asarray(r_ref))

    p = jax.block_until_ready(quantized_maxpool2x2(q))
    p_ref = (
        q_ref.astype(jnp.int32).reshape(2, 8, 16, 2, 16, 2).max(axis=(3, 5)).astype(jnp.uint8)
    )
    np.testing.assert_array_equal(np.asarray(p), np.asarray(p_ref))

    # fused stages must equal the composed (quantize -> op) path bit-for-bit
    fr = jax.block_until_ready(quantize_then_relu(x))
    np.testing.assert_array_equal(np.asarray(fr), np.asarray(r_ref))
    fp = jax.block_until_ready(quantize_then_maxpool2x2(x))
    np.testing.assert_array_equal(np.asarray(fp), np.asarray(p_ref))

    # smallest pool stage (single-row output block) and the FC-shaped ReLU stage
    xs = jax.random.uniform(jax.random.PRNGKey(1), (2, 64, 2, 2), dtype=jnp.float32)
    ps = jax.block_until_ready(quantize_then_maxpool2x2(xs))
    qs_ref = jnp.clip(jnp.round(xs / SCALE).astype(jnp.int32) + ZERO_POINT, 0, 255)
    ps_ref = qs_ref.reshape(2, 64, 1, 2, 1, 2).max(axis=(3, 5)).astype(jnp.uint8)
    np.testing.assert_array_equal(np.asarray(ps), np.asarray(ps_ref))

    xf = jax.random.uniform(jax.random.PRNGKey(2), (2, 128), dtype=jnp.float32)
    rf = jax.block_until_ready(quantize_then_relu(xf))
    rf_ref = jnp.clip(
        jnp.round(xf / SCALE).astype(jnp.int32) + ZERO_POINT, ZERO_POINT, 255
    ).astype(jnp.uint8)
    np.testing.assert_array_equal(np.asarray(rf), np.asarray(rf_ref))

    # ---- drive the full client pipeline exactly as the PyTorch forward would ----
    model = VGG19(batch_size=2)
    i = 1
    while i <= max(model.ops):
        if i in model.ops:
            i = model.forward(i)   # runs all consecutive client stages, returns next gap
        else:
            i = i + 1              # gap = server-side (conv/linear) stage, skipped by client
    assert len(model.time) == len(model.ops)

    print("KERNEL_OK")
</pallas_src>

<mosaic_0001>
module attributes {stable_mosaic.version = 11 : i64} {
  func.func @_quantize_kernel(%arg0: memref<128x128xf32, #tpu.memory_space<vmem>>, %arg1: memref<128x128xi8, #tpu.memory_space<vmem>>) attributes {dimension_semantics = [], scalar_prefetch = 0 : i64, scratch_operands = 0 : i64, tpu.core_type = #tpu.core_type<tc>} {
    %c0 = arith.constant 0 : index
    %c0_0 = arith.constant 0 : index
    %0 = vector.load %arg0[%c0, %c0_0] : memref<128x128xf32, #tpu.memory_space<vmem>>, vector<128x128xf32>
    %cst = arith.constant 4.720000e-02 : f32
    %1 = vector.broadcast %cst : f32 to vector<128x128xf32>
    %2 = arith.divf %0, %1 : vector<128x128xf32>
    %3 = math.roundeven %2 : vector<128x128xf32>
    %4 = arith.fptosi %3 : vector<128x128xf32> to vector<128x128xi32>
    %c64_i32 = arith.constant 64 : i32
    %5 = vector.broadcast %c64_i32 : i32 to vector<128x128xi32>
    %6 = arith.addi %4, %5 : vector<128x128xi32>
    %c0_i32 = arith.constant 0 : i32
    %c255_i32 = arith.constant 255 : i32
    %7 = vector.broadcast %c0_i32 : i32 to vector<128x128xi32>
    %8 = arith.maxsi %7, %6 : vector<128x128xi32>
    %9 = vector.broadcast %c255_i32 : i32 to vector<128x128xi32>
    %10 = arith.minsi %9, %8 : vector<128x128xi32>
    %11 = arith.trunci %10 : vector<128x128xi32> to vector<128x128xi8>
    %c0_1 = arith.constant 0 : index
    %c0_2 = arith.constant 0 : index
    %12 = vector.load %arg1[%c0_1, %c0_2] : memref<128x128xi8, #tpu.memory_space<vmem>>, vector<128x128xi8>
    tpu.vector_store %arg1[%c0_1, %c0_2], %11 {strides = array<i32>} : memref<128x128xi8, #tpu.memory_space<vmem>>, vector<128x128xi8>,
    return
  }
}

</mosaic_0001>

<llo_original>
// kernel: quantize_per_tensor.1
$region0: #{quantize_per_tensor.1}
  #allocation0 [shape = 'u32[]', space=smem, size = 0x4, offset = 0x4, fixed_abs, tag = 'smem constant byte address 0x4 - core index']
  #allocation1 [shape = 'u32[144,128]{1,0:T(1,128)}', space=vmem, size = 0x12000, scoped, tag = 'internal scratch']
  %s0 = inlined_call_operand.vmem [shape: f32[128,128], index: 0, kind: input, shape index: {}]
  %s1 = inlined_call_operand.vmem [shape: u8[128,128], index: 1, kind: output, shape index: {}]
  %s2 = sld [smem:[#allocation0]]
  $region14: #{quantize_per_tensor.1} parent=0
    _
  %s4 = ssub.s32 1, %s2
  %s5 = scalar_select 0, %s4, %s2
  // Predicated region
  $region2: #{quantize_per_tensor.1} parent=0 // pred_check
    _
  $region3: #{quantize_per_tensor.1} parent=0 // pred_check_branch
    %7 = sbr.rel (0) target = $region5
  $region4: #{quantize_per_tensor.1} parent=0 // pred_region
    _
  $region5: #{quantize_per_tensor.1} parent=0 // pred_fallthru
    _
  %v8 = vld [vmem:[%s0] sm:$0xff]
  %v9 = vld [vmem:[%s0 + $0x8] sm:$0xff]
  %v10 = vld [vmem:[%s0 + $0x10] sm:$0xff]
  %v11 = vld [vmem:[%s0 + $0x18] sm:$0xff]
  %v12 = vld [vmem:[%s0 + $0x20] sm:$0xff]
  %v13 = vld [vmem:[%s0 + $0x28] sm:$0xff]
  %v14 = vld [vmem:[%s0 + $0x30] sm:$0xff]
  %v15 = vld [vmem:[%s0 + $0x38] sm:$0xff]
  %v16 = vld [vmem:[%s0 + $0x40] sm:$0xff]
  %v17 = vld [vmem:[%s0 + $0x48] sm:$0xff]
  %v18 = vld [vmem:[%s0 + $0x50] sm:$0xff]
  %v19 = vld [vmem:[%s0 + $0x58] sm:$0xff]
  %v20 = vld [vmem:[%s0 + $0x60] sm:$0xff]
  %v21 = vld [vmem:[%s0 + $0x68] sm:$0xff]
  %v22 = vld [vmem:[%s0 + $0x70] sm:$0xff]
  %v23 = vld [vmem:[%s0 + $0x78] sm:$0xff]
  %v24 = vrcp.pop 0.0472
  %v25 = vmul.f32 %v8, %v24
  %v26 = vmul.f32 %v9, %v24
  %v27 = vmul.f32 %v10, %v24
  %v28 = vmul.f32 %v11, %v24
  %v29 = vmul.f32 %v12, %v24
  %v30 = vmul.f32 %v13, %v24
  %v31 = vmul.f32 %v14, %v24
  %v32 = vmul.f32 %v15, %v24
  %v33 = vmul.f32 %v16, %v24
  %v34 = vmul.f32 %v17, %v24
  %v35 = vmul.f32 %v18, %v24
  %v36 = vmul.f32 %v19, %v24
  %v37 = vmul.f32 %v20, %v24
  %v38 = vmul.f32 %v21, %v24
  %v39 = vmul.f32 %v22, %v24
  %v40 = vmul.f32 %v23, %v24
  %v41 = vcvt.f32.s32.ties.to.even %v25
  %v42 = vcvt.f32.s32.ties.to.even %v26
  %v43 = vcvt.f32.s32.ties.to.even %v27
  %v44 = vcvt.f32.s32.ties.to.even %v28
  %v45 = vcvt.f32.s32.ties.to.even %v29
  %v46 = vcvt.f32.s32.ties.to.even %v30
  %v47 = vcvt.f32.s32.ties.to.even %v31
  %v48 = vcvt.f32.s32.ties.to.even %v32
  %v49 = vcvt.f32.s32.ties.to.even %v33
  %v50 = vcvt.f32.s32.ties.to.even %v34
  %v51 = vcvt.f32.s32.ties.to.even %v35
  %v52 = vcvt.f32.s32.ties.to.even %v36
  %v53 = vcvt.f32.s32.ties.to.even %v37
  %v54 = vcvt.f32.s32.ties.to.even %v38
  %v55 = vcvt.f32.s32.ties.to.even %v39
  %v56 = vcvt.f32.s32.ties.to.even %v40
  %v57 = vadd.s32 %v41, 64
  %v58 = vadd.s32 %v42, 64
  %v59 = vadd.s32 %v43, 64
  %v60 = vadd.s32 %v44, 64
  %v61 = vadd.s32 %v45, 64
  %v62 = vadd.s32 %v46, 64
  %v63 = vadd.s32 %v47, 64
  %v64 = vadd.s32 %v48, 64
  %v65 = vadd.s32 %v49, 64
  %v66 = vadd.s32 %v50, 64
  %v67 = vadd.s32 %v51, 64
  %v68 = vadd.s32 %v52, 64
  %v69 = vadd.s32 %v53, 64
  %v70 = vadd.s32 %v54, 64
  %v71 = vadd.s32 %v55, 64
  %v72 = vadd.s32 %v56, 64
  %vm73 = vcmp.gt.s32.totalorder %v57, 0
  %v74 = vsel %vm73, %v57, 0
  %vm75 = vcmp.gt.s32.totalorder %v58, 0
  %v76 = vsel %vm75, %v58, 0
  %vm77 = vcmp.gt.s32.totalorder %v59, 0
  %v78 = vsel %vm77, %v59, 0
  %vm79 = vcmp.gt.s32.totalorder %v60, 0
  %v80 = vsel %vm79, %v60, 0
  %vm81 = vcmp.gt.s32.totalorder %v61, 0
  %v82 = vsel %vm81, %v61, 0
  %vm83 = vcmp.gt.s32.totalorder %v62, 0
  %v84 = vsel %vm83, %v62, 0
  %vm85 = vcmp.gt.s32.totalorder %v63, 0
  %v86 = vsel %vm85, %v63, 0
  %vm87 = vcmp.gt.s32.totalorder %v64, 0
  %v88 = vsel %vm87, %v64, 0
  %vm89 = vcmp.gt.s32.totalorder %v65, 0
  %v90 = vsel %vm89, %v65, 0
  %vm91 = vcmp.gt.s32.totalorder %v66, 0
  %v92 = vsel %vm91, %v66, 0
  %vm93 = vcmp.gt.s32.totalorder %v67, 0
  %v94 = vsel %vm93, %v67, 0
  %vm95 = vcmp.gt.s32.totalorder %v68, 0
  %v96 = vsel %vm95, %v68, 0
  %vm97 = vcmp.gt.s32.totalorder %v69, 0
  %v98 = vsel %vm97, %v69, 0
  %vm99 = vcmp.gt.s32.totalorder %v70, 0
  %v100 = vsel %vm99, %v70, 0
  %vm101 = vcmp.gt.s32.totalorder %v71, 0
  %v102 = vsel %vm101, %v71, 0
  %vm103 = vcmp.gt.s32.totalorder %v72, 0
  %v104 = vsel %vm103, %v72, 0
  %vm105 = vcmp.lt.s32.totalorder %v74, 255
  %v106 = vsel %vm105, %v74, 255
  %vm107 = vcmp.lt.s32.totalorder %v76, 255
  %v108 = vsel %vm107, %v76, 255
  %vm109 = vcmp.lt.s32.totalorder %v78, 255
  %v110 = vsel %vm109, %v78, 255
  %vm111 = vcmp.lt.s32.totalorder %v80, 255
  %v112 = vsel %vm111, %v80, 255
  %vm113 = vcmp.lt.s32.totalorder %v82, 255
  %v114 = vsel %vm113, %v82, 255
  %vm115 = vcmp.lt.s32.totalorder %v84, 255
  %v116 = vsel %vm115, %v84, 255
  %vm117 = vcmp.lt.s32.totalorder %v86, 255
  %v118 = vsel %vm117, %v86, 255
  %vm119 = vcmp.lt.s32.totalorder %v88, 255
  %v120 = vsel %vm119, %v88, 255
  %vm121 = vcmp.lt.s32.totalorder %v90, 255
  %v122 = vsel %vm121, %v90, 255
  %vm123 = vcmp.lt.s32.totalorder %v92, 255
  %v124 = vsel %vm123, %v92, 255
  %vm125 = vcmp.lt.s32.totalorder %v94, 255
  %v126 = vsel %vm125, %v94, 255
  %vm127 = vcmp.lt.s32.totalorder %v96, 255
  %v128 = vsel %vm127, %v96, 255
  %vm129 = vcmp.lt.s32.totalorder %v98, 255
  %v130 = vsel %vm129, %v98, 255
  %vm131 = vcmp.lt.s32.totalorder %v100, 255
  %v132 = vsel %vm131, %v100, 255
  %vm133 = vcmp.lt.s32.totalorder %v102, 255
  %v134 = vsel %vm133, %v102, 255
  %vm135 = vcmp.lt.s32.totalorder %v104, 255
  %v136 = vsel %vm135, %v104, 255
  %v137 = vpack.c.b16 %v108, %v106
  %v138 = vpack.c.b16 %v112, %v110
  %v139 = vpack.c.b8 %v138, %v137
  %v140 = vpack.c.b16 %v116, %v114
  %v141 = vpack.c.b16 %v120, %v118
  %v142 = vpack.c.b8 %v141, %v140
  %v143 = vpack.c.b16 %v124, %v122
  %v144 = vpack.c.b16 %v128, %v126
  %v145 = vpack.c.b8 %v144, %v143
  %v146 = vpack.c.b16 %v132, %v130
  %v147 = vpack.c.b16 %v136, %v134
  %v148 = vpack.c.b8 %v147, %v146
  %149 = vst [vmem:[%s1] sm:$0xff] %v139
  %150 = vst [vmem:[%s1 + $0x8] sm:$0xff] %v142
  %151 = vst [vmem:[%s1 + $0x10] sm:$0xff] %v145
  %152 = vst [vmem:[%s1 + $0x18] sm:$0xff] %v148
  // Predicated region
  $region6: #{quantize_per_tensor.1} parent=0 // pred_check
    _
  $region7: #{quantize_per_tensor.1} parent=0 // pred_check_branch
    %154 = sbr.rel (0) target = $region9
  $region8: #{quantize_per_tensor.1} parent=0 // pred_region
    _
  $region9: #{quantize_per_tensor.1} parent=0 // pred_fallthru
    _
  // Predicated region
  $region10: #{quantize_per_tensor.1} parent=0 // pred_check
    _
  $region11: #{quantize_per_tensor.1} parent=0 // pred_check_branch
    %156 = sbr.rel (0) target = $region13
  $region12: #{quantize_per_tensor.1} parent=0 // pred_region
    _
  $region13: #{quantize_per_tensor.1} parent=0 // pred_fallthru
    _

</llo_original>
